<compile_context>
chip_gen: v7x
topology: tpu7x:2x2x1
jax: 0.10.0
libtpu: 0.0.40
codegen_flags: <defaults>
</compile_context>

<pallas_src>
import functools

import jax
import jax.numpy as jnp
from jax.experimental import pallas as pl
from jax.experimental.pallas import tpu as pltpu


def _round_up(a: int, b: int) -> int:
    return ((a + b - 1) // b) * b


def _glu_kernel(x_ref, wc_ref, bc_ref, o_ref, *, tn: int):
    # One fused matmul: [tm, K] @ [K, 2*tn] -> [tm, 2*tn] (f32 accumulation).
    y = jnp.dot(x_ref[...], wc_ref[...], preferred_element_type=jnp.float32)
    y = y + bc_ref[...].astype(jnp.float32)
    y1 = y[:, :tn]          # gate pre-activation  (x @ W1^T + b1)
    y2 = y[:, tn:]          # value                (x @ W2^T + b2)
    o_ref[...] = (jax.nn.sigmoid(y1) * y2).astype(o_ref.dtype)


def gated_linear_unit(x, w1, b1, w2, b2, *, tm=256, tn=256):
    """GLU forward.

    x: [..., H]; w1/w2: PyTorch-style [out, in] = [H, H]; b1/b2: [H].
    tm/tn: row / output-column tile sizes (tuned per TPU generation;
    tm multiple of the dtype sublane granularity, tn multiple of 128).
    """
    orig_shape = x.shape
    H = orig_shape[-1]
    x2d = x.reshape(-1, H)
    M = x2d.shape[0]
    dtype = x.dtype
    itemsize = jnp.dtype(dtype).itemsize

    # Minimum sublane granularity for the row tile (f32: 8, bf16: 16, int8/fp8: 32).
    sub = {4: 8, 2: 16, 1: 32}.get(itemsize, 8)

    # Effective tiles: clamp to (padded) problem size, keep alignment.
    tm_eff = _round_up(min(tm, _round_up(M, sub)), sub)
    m_pad = _round_up(M, tm_eff)

    k_pad = _round_up(H, 128)                      # contraction (lane-aligned)
    tn_eff = _round_up(min(tn, _round_up(H, 128)), 128)
    n_pad = _round_up(H, tn_eff)
    n_tiles = n_pad // tn_eff

    # --- Parameter prep (glue; hoist to init in a real model) -------------
    def _prep(w, b):
        wt = w.T.astype(dtype)                                  # [in, out]
        wt = jnp.pad(wt, ((0, k_pad - H), (0, n_pad - H)))
        bp = jnp.pad(b.astype(dtype), (0, n_pad - H))
        return wt, bp

    w1t, b1p = _prep(w1, b1)
    w2t, b2p = _prep(w2, b2)

    # Interleave per output-column tile: column block j of the fused weight
    # is [W1^T tile j | W2^T tile j], so each grid point reads one slab.
    wc = jnp.stack(
        [w1t.reshape(k_pad, n_tiles, tn_eff),
         w2t.reshape(k_pad, n_tiles, tn_eff)],
        axis=2,
    ).reshape(k_pad, 2 * n_pad)
    bc = jnp.stack(
        [b1p.reshape(n_tiles, tn_eff),
         b2p.reshape(n_tiles, tn_eff)],
        axis=1,
    ).reshape(1, 2 * n_pad)

    # Zero-pad activations (padded K columns hit zero weight rows -> no-op).
    x_p = x2d
    if (m_pad, k_pad) != (M, H):
        x_p = jnp.pad(x2d, ((0, m_pad - M), (0, k_pad - H)))

    grid = (n_tiles, m_pad // tm_eff)   # N outer (weights fetched once per column tile)

    cost = pl.CostEstimate(
        flops=4 * M * H * H,                        # two H x H matmuls
        transcendentals=M * H,                      # sigmoid
        bytes_accessed=(2 * M * H + 2 * H * H + 2 * H) * itemsize,
    )

    out = pl.pallas_call(
        functools.partial(_glu_kernel, tn=tn_eff),
        out_shape=jax.ShapeDtypeStruct((m_pad, n_pad), dtype),
        grid_spec=pltpu.PrefetchScalarGridSpec(
            num_scalar_prefetch=0,
            grid=grid,
            in_specs=[
                pl.BlockSpec((tm_eff, k_pad), lambda j, i: (i, 0)),       # x rows
                pl.BlockSpec((k_pad, 2 * tn_eff), lambda j, i: (0, j)),   # fused W tile
                pl.BlockSpec((1, 2 * tn_eff), lambda j, i: (0, j)),       # fused bias tile
            ],
            out_specs=pl.BlockSpec((tm_eff, tn_eff), lambda j, i: (i, j)),
        ),
        compiler_params=pltpu.CompilerParams(
            dimension_semantics=("parallel", "parallel"),
        ),
        cost_estimate=cost,
    )(x_p, wc, bc)

    return out[:M, :H].reshape(orig_shape)


def _reference_glu(x, w1, b1, w2, b2):
    y1 = x @ w1.T + b1
    y2 = x @ w2.T + b2
    return jax.nn.sigmoid(y1) * y2


if __name__ == "__main__":
    key = jax.random.PRNGKey(0)

    # --- Test 1: module-sized shapes (batch=2, seq=8, hidden=32) ----------
    batch, seq, hidden = 2, 8, 32
    k_x, k_w1, k_b1, k_w2, k_b2 = jax.random.split(key, 5)
    x = jax.random.normal(k_x, (batch, seq, hidden), dtype=jnp.float32)

    bound = 1.0 / jnp.sqrt(hidden)
    w1 = jax.random.uniform(k_w1, (hidden, hidden), jnp.float32, -bound, bound)
    b1 = jax.random.uniform(k_b1, (hidden,), jnp.float32, -bound, bound)
    w2 = jax.random.uniform(k_w2, (hidden, hidden), jnp.float32, -bound, bound)
    b2 = jax.random.uniform(k_b2, (hidden,), jnp.float32, -bound, bound)

    out = jax.block_until_ready(gated_linear_unit(x, w1, b1, w2, b2))
    ref = _reference_glu(x, w1, b1, w2, b2)
    assert out.shape == x.shape
    assert jnp.allclose(out, ref, atol=1e-5, rtol=1e-5)

    # --- Test 2: non-divisible rows + larger hidden (exercises padding) ---
    batch2, seq2, hidden2 = 3, 50, 256
    k2 = jax.random.PRNGKey(1)
    k_x2, k_w12, k_b12, k_w22, k_b22 = jax.random.split(k2, 5)
    x2 = jax.random.normal(k_x2, (batch2, seq2, hidden2), dtype=jnp.float32)
    bound2 = 1.0 / jnp.sqrt(hidden2)
    w12 = jax.random.uniform(k_w12, (hidden2, hidden2), jnp.float32, -bound2, bound2)
    b12 = jax.random.uniform(k_b12, (hidden2,), jnp.float32, -bound2, bound2)
    w22 = jax.random.uniform(k_w22, (hidden2, hidden2), jnp.float32, -bound2, bound2)
    b22 = jax.random.uniform(k_b22, (hidden2,), jnp.float32, -bound2, bound2)

    out2 = jax.block_until_ready(gated_linear_unit(x2, w12, b12, w22, b22))
    ref2 = _reference_glu(x2, w12, b12, w22, b22)
    assert out2.shape == x2.shape
    assert jnp.allclose(out2, ref2, atol=2e-3, rtol=2e-3)

    print("KERNEL_OK")
</pallas_src>

<mosaic_0001>
module attributes {stable_mosaic.version = 11 : i64} {
  func.func @_glu_kernel(%arg0: i32, %arg1: i32, %arg2: memref<16x128xf32, #tpu.memory_space<vmem>>, %arg3: memref<128x256xf32, #tpu.memory_space<vmem>>, %arg4: memref<1x256xf32, #tpu.memory_space<vmem>>, %arg5: memref<16x128xf32, #tpu.memory_space<vmem>>) attributes {dimension_semantics = [#tpu.dimension_semantics<parallel>, #tpu.dimension_semantics<parallel>], iteration_bounds = array<i64: 1, 1>, scalar_prefetch = 0 : i64, scratch_operands = 0 : i64, tpu.core_type = #tpu.core_type<tc>, window_params = [{transform_indices = @transform_0, window_bounds = array<i64: 16, 128>}, {transform_indices = @transform_1, window_bounds = array<i64: 128, 256>}, {transform_indices = @transform_2, window_bounds = array<i64: 1, 256>}, {transform_indices = @transform_3, window_bounds = array<i64: 16, 128>}]} {
    %c0 = arith.constant 0 : index
    %c0_0 = arith.constant 0 : index
    %0 = vector.load %arg2[%c0, %c0_0] : memref<16x128xf32, #tpu.memory_space<vmem>>, vector<16x128xf32>
    %c0_1 = arith.constant 0 : index
    %c0_2 = arith.constant 0 : index
    %1 = vector.load %arg3[%c0_1, %c0_2] : memref<128x256xf32, #tpu.memory_space<vmem>>, vector<128x256xf32>
    %cst = arith.constant dense<0.000000e+00> : vector<16x256xf32>
    %2 = tpu.matmul %0, %1, %cst {dimension_numbers = #tpu.dot_dimension_numbers<[1], [0], [0], [1], [0, 0, 1, 1], [], []>} : vector<16x128xf32>, vector<128x256xf32>, vector<16x256xf32> -> vector<16x256xf32>
    %c0_3 = arith.constant 0 : index
    %c0_4 = arith.constant 0 : index
    %3 = vector.load %arg4[%c0_3, %c0_4] : memref<1x256xf32, #tpu.memory_space<vmem>>, vector<1x256xf32>
    %4 = vector.broadcast %3 : vector<1x256xf32> to vector<16x256xf32>
    %5 = arith.addf %2, %4 : vector<16x256xf32>
    %6 = vector.extract_strided_slice %5 {offsets = [0, 0], sizes = [16, 128], strides = [1, 1]} : vector<16x256xf32> to vector<16x128xf32>
    %7 = vector.extract_strided_slice %5 {offsets = [0, 128], sizes = [16, 128], strides = [1, 1]} : vector<16x256xf32> to vector<16x128xf32>
    %8 = arith.negf %6 : vector<16x128xf32>
    %9 = math.exp %8 : vector<16x128xf32>
    %cst_5 = arith.constant 1.000000e+00 : f32
    %10 = vector.broadcast %cst_5 : f32 to vector<16x128xf32>
    %11 = arith.addf %10, %9 : vector<16x128xf32>
    %12 = arith.divf %10, %11 : vector<16x128xf32>
    %13 = arith.mulf %12, %7 : vector<16x128xf32>
    %c0_6 = arith.constant 0 : index
    %c0_7 = arith.constant 0 : index
    %14 = vector.load %arg5[%c0_6, %c0_7] : memref<16x128xf32, #tpu.memory_space<vmem>>, vector<16x128xf32>
    tpu.vector_store %arg5[%c0_6, %c0_7], %13 {strides = array<i32>} : memref<16x128xf32, #tpu.memory_space<vmem>>, vector<16x128xf32>,
    return
  }
  func.func @transform_0(%arg0: i32, %arg1: i32) -> (i32, i32) {
    %c0_i32 = arith.constant 0 : i32
    %c0_i32_0 = arith.constant 0 : i32
    return %arg1, %c0_i32 : i32, i32
  }
  func.func @transform_1(%arg0: i32, %arg1: i32) -> (i32, i32) {
    %c0_i32 = arith.constant 0 : i32
    %c0_i32_0 = arith.constant 0 : i32
    return %c0_i32, %arg0 : i32, i32
  }
  func.func @transform_2(%arg0: i32, %arg1: i32) -> (i32, i32) {
    %c0_i32 = arith.constant 0 : i32
    %c0_i32_0 = arith.constant 0 : i32
    return %c0_i32, %arg0 : i32, i32
  }
  func.func @transform_3(%arg0: i32, %arg1: i32) -> (i32, i32) {
    %c0_i32 = arith.constant 0 : i32
    return %arg1, %arg0 : i32, i32
  }
}

</mosaic_0001>

<llo_original>
// kernel: tpu_custom_call.1
$region0: #{tpu_custom_call.1}
  #allocation0 [shape = 'u32[]', space=smem, size = 0x4, offset = 0x4, fixed_abs, tag = 'smem constant byte address 0x4 - core index']
  #allocation1 [shape = 'u32[144,128]{1,0:T(1,128)}', space=vmem, size = 0x12000, scoped, tag = 'internal scratch']
  %s0 = inlined_call_operand.hbm [shape: f32[16,128], index: 0, kind: input, shape index: {}]
  %s1 = inlined_call_operand.hbm [shape: f32[128,256], index: 1, kind: input, shape index: {}]
  %s2 = inlined_call_operand.vmem [shape: f32[1,256], index: 2, kind: input, shape index: {}]
  %s3 = inlined_call_operand.hbm [shape: f32[16,128], index: 3, kind: output, shape index: {}]
  %s4 = sld [smem:[#allocation0]]
  $region30: #{tpu_custom_call.1} parent=0
    _
  %s6 = ssub.s32 1, %s4
  %s7 = scalar_select 0, %s6, %s4
  $region1: #{tpu_custom_call.1} parent=0
    #allocation2 [shape = 'u8[8192]{0}', space=vmem, size = 0x2000, scoped, tag = 'input window, operand 0, single buffered']
    #allocation3 [shape = 's32[1]{0}', space=sflag, size = 0x4, scoped, tag = 'scoped memory for tpu_custom_call.1']
    #allocation4 [shape = 's32[1]{0}', space=sflag, size = 0x4, scoped, tag = 'scoped memory for tpu_custom_call.1']
    #allocation5 [shape = 'u8[131072]{0}', space=vmem, size = 0x20000, scoped, tag = 'input window, operand 1, single buffered']
    #allocation6 [shape = 's32[1]{0}', space=sflag, size = 0x4, scoped, tag = 'scoped memory for tpu_custom_call.1']
    #allocation7 [shape = 'u8[8192]{0}', space=vmem, size = 0x2000, scoped, tag = 'output window, operand 0, single buffered']
    %8 = vsyncpa [#allocation3], 0
    %9 = vsyncpa [#allocation6], 0
    %10 = vsyncpa [#allocation4], 0
    // Predicated region
    $region2: #{tpu_custom_call.1} parent=1 // pred_check
      _
    $region3: #{tpu_custom_call.1} parent=1 // pred_check_branch
      %12 = sbr.rel (0) target = $region5
    $region4: #{tpu_custom_call.1} parent=1 // pred_region
      %s14 = ssub.s32 256, 256
      %15 = vsyncadd [#allocation3], %s14
      %s16 = sshll.u32 [#allocation2], 4
      %s17 = int_to_ptr.vmem [resolvable:$true] %s16
      %22 = dma.hbm_to_vmem [thread:$0]  %s0, 256, %s17, [#allocation3], 128, 128, 8
    $region5: #{tpu_custom_call.1} parent=1 // pred_fallthru
      _
    // Predicated region
    $region6: #{tpu_custom_call.1} parent=1 // pred_check
      _
    $region7: #{tpu_custom_call.1} parent=1 // pred_check_branch
      %24 = sbr.rel (0) target = $region9
    $region8: #{tpu_custom_call.1} parent=1 // pred_region
      %s26 = ssub.s32 4096, 4096
      %27 = vsyncadd [#allocation6], %s26
      %s28 = sshll.u32 [#allocation5], 4
      %s29 = int_to_ptr.vmem [resolvable:$true] %s28
      %34 = dma.hbm_to_vmem [thread:$0]  %s1, 4096, %s29, [#allocation6], 256, 256, 16
    $region9: #{tpu_custom_call.1} parent=1 // pred_fallthru
      _
    // Predicated region
    $region10: #{tpu_custom_call.1} parent=1 // pred_check
      _
    $region11: #{tpu_custom_call.1} parent=1 // pred_check_branch
      %36 = sbr.rel (0) target = $region13
    $region12: #{tpu_custom_call.1} parent=1 // pred_region
      _
    $region13: #{tpu_custom_call.1} parent=1 // pred_fallthru
      _
    // Predicated region
    $region14: #{tpu_custom_call.1} parent=1 // pred_check
      _
    $region15: #{tpu_custom_call.1} parent=1 // pred_check_branch
      %38 = sbr.rel (0) target = $region17
    $region16: #{tpu_custom_call.1} parent=1 // pred_region
      %39 = dma.done [#allocation3], 256
    $region17: #{tpu_custom_call.1} parent=1 // pred_fallthru
      _
    // Predicated region
    $region18: #{tpu_custom_call.1} parent=1 // pred_check
      _
    $region19: #{tpu_custom_call.1} parent=1 // pred_check_branch
      %41 = sbr.rel (0) target = $region21
    $region20: #{tpu_custom_call.1} parent=1 // pred_region
      %42 = dma.done [#allocation6], 4096
    $region21: #{tpu_custom_call.1} parent=1 // pred_fallthru
      _
    %v43 = vld [vmem:[#allocation2] sm:$0xff]
    %v44 = vld [vmem:[#allocation2 + $0x8] sm:$0xff]
    %v45 = vld [vmem:[#allocation5] sm:$0xff]
    %v46 = vld [vmem:[#allocation5 + $0x8] sm:$0xff]
    %v47 = vld [vmem:[#allocation5 + $0x10] sm:$0xff]
    %v48 = vld [vmem:[#allocation5 + $0x18] sm:$0xff]
    %v49 = vld [vmem:[#allocation5 + $0x20] sm:$0xff]
    %v50 = vld [vmem:[#allocation5 + $0x28] sm:$0xff]
    %v51 = vld [vmem:[#allocation5 + $0x30] sm:$0xff]
    %v52 = vld [vmem:[#allocation5 + $0x38] sm:$0xff]
    %v53 = vld [vmem:[#allocation5 + $0x40] sm:$0xff]
    %v54 = vld [vmem:[#allocation5 + $0x48] sm:$0xff]
    %v55 = vld [vmem:[#allocation5 + $0x50] sm:$0xff]
    %v56 = vld [vmem:[#allocation5 + $0x58] sm:$0xff]
    %v57 = vld [vmem:[#allocation5 + $0x60] sm:$0xff]
    %v58 = vld [vmem:[#allocation5 + $0x68] sm:$0xff]
    %v59 = vld [vmem:[#allocation5 + $0x70] sm:$0xff]
    %v60 = vld [vmem:[#allocation5 + $0x78] sm:$0xff]
    %v61 = vld [vmem:[#allocation5 + $0x80] sm:$0xff]
    %v62 = vld [vmem:[#allocation5 + $0x88] sm:$0xff]
    %v63 = vld [vmem:[#allocation5 + $0x90] sm:$0xff]
    %v64 = vld [vmem:[#allocation5 + $0x98] sm:$0xff]
    %v65 = vld [vmem:[#allocation5 + $0xa0] sm:$0xff]
    %v66 = vld [vmem:[#allocation5 + $0xa8] sm:$0xff]
    %v67 = vld [vmem:[#allocation5 + $0xb0] sm:$0xff]
    %v68 = vld [vmem:[#allocation5 + $0xb8] sm:$0xff]
    %v69 = vld [vmem:[#allocation5 + $0xc0] sm:$0xff]
    %v70 = vld [vmem:[#allocation5 + $0xc8] sm:$0xff]
    %v71 = vld [vmem:[#allocation5 + $0xd0] sm:$0xff]
    %v72 = vld [vmem:[#allocation5 + $0xd8] sm:$0xff]
    %v73 = vld [vmem:[#allocation5 + $0xe0] sm:$0xff]
    %v74 = vld [vmem:[#allocation5 + $0xe8] sm:$0xff]
    %v75 = vld [vmem:[#allocation5 + $0xf0] sm:$0xff]
    %v76 = vld [vmem:[#allocation5 + $0xf8] sm:$0xff]
    %v77 = vld [vmem:[%s2] sm:$0x3]
    %v79 = vlaneseq
    %v80 = vshrl.u32 %v79, 7
    %v81 = vsub.s32 0, %v80
    %v82 = vrot.slane %v77, %v81
    %v83 = vlaneseq
    %v84 = vshrl.u32 %v83, 7
    %v85 = vsub.s32 1, %v84
    %v86 = vrot.slane %v77, %v85
    %89 = vmatprep.subr.mxu0 %v46
    %90 = vmatpush1.msra.mxu0 %v45
    %91 = vmatprep.subr.mxu0 %v48
    %92 = vmatpush1.msra.mxu0 %v47
    %93 = vmatprep.subr.mxu0 %v50
    %94 = vmatpush1.msra.mxu0 %v49
    %95 = vmatprep.subr.mxu0 %v52
    %96 = vmatpush1.msra.mxu0 %v51
    %97 = vmatprep.subr.mxu0 %v54
    %98 = vmatpush1.msra.mxu0 %v53
    %99 = vmatprep.subr.mxu0 %v56
    %100 = vmatpush1.msra.mxu0 %v55
    %101 = vmatprep.subr.mxu0 %v58
    %102 = vmatpush1.msra.mxu0 %v57
    %103 = vmatprep.subr.mxu0 %v60
    %104 = vmatpush1.msra.mxu0 %v59
    %105 = vmatprep.subr.mxu0 %v62
    %106 = vmatpush1.msra.mxu0 %v61
    %107 = vmatprep.subr.mxu0 %v64
    %108 = vmatpush1.msra.mxu0 %v63
    %109 = vmatprep.subr.mxu0 %v66
    %110 = vmatpush1.msra.mxu0 %v65
    %111 = vmatprep.subr.mxu0 %v68
    %112 = vmatpush1.msra.mxu0 %v67
    %113 = vmatprep.subr.mxu0 %v70
    %114 = vmatpush1.msra.mxu0 %v69
    %115 = vmatprep.subr.mxu0 %v72
    %116 = vmatpush1.msra.mxu0 %v71
    %117 = vmatprep.subr.mxu0 %v74
    %118 = vmatpush1.msra.mxu0 %v73
    %119 = vmatprep.subr.mxu0 %v76
    %120 = vmatpush1.msra.mxu0 %v75
    %121 = vmatprep.subr.mxu0 0.0
    %122 = vmatpush1.msra.mxu0 0.0
    %123 = vmatprep.subr.mxu0 0.0
    %124 = vmatpush1.msra.mxu0 0.0
    %125 = vmatprep.subr.mxu0 0.0
    %126 = vmatpush1.msra.mxu0 0.0
    %127 = vmatprep.subr.mxu0 0.0
    %128 = vmatpush1.msra.mxu0 0.0
    %129 = vmatprep.subr.mxu0 0.0
    %130 = vmatpush1.msra.mxu0 0.0
    %131 = vmatprep.subr.mxu0 0.0
    %132 = vmatpush1.msra.mxu0 0.0
    %133 = vmatprep.subr.mxu0 0.0
    %134 = vmatpush1.msra.mxu0 0.0
    %135 = vmatprep.subr.mxu0 0.0
    %136 = vmatpush1.msra.mxu0 0.0
    %137 = vmatprep.subr.mxu0 0.0
    %138 = vmatpush1.msra.mxu0 0.0
    %139 = vmatprep.subr.mxu0 0.0
    %140 = vmatpush1.msra.mxu0 0.0
    %141 = vmatprep.subr.mxu0 0.0
    %142 = vmatpush1.msra.mxu0 0.0
    %143 = vmatprep.subr.mxu0 0.0
    %144 = vmatpush1.msra.mxu0 0.0
    %145 = vmatprep.subr.mxu0 0.0
    %146 = vmatpush1.msra.mxu0 0.0
    %147 = vmatprep.subr.mxu0 0.0
    %148 = vmatpush1.msra.mxu0 0.0
    %149 = vmatprep.subr.mxu0 0.0
    %150 = vmatpush1.msra.mxu0 0.0
    %151 = vmatprep.subr.mxu0 0.0
    %152 = vmatpush1.msra.mxu0 0.0
    %153 = vmatprep.mubr.f32.mxu0 0.0
    %154 = vmatmul.mubr.f32.gmra.mrb[0].mxu0 %v43
    %v155 = vpop.f32.mrb[0].mxu0
    %v156 = vadd.f32 %v82, %v155
    %v157 = vpop.f32.mrb[0].mxu0
    %v158 = vadd.f32 %v86, %v157
    %159 = vmatprep.mubr.f32.mxu0 0.0
    %160 = vmatmul.mubr.f32.gmra.mrb[0].mxu0 %v44
    %v161 = vpop.f32.mrb[0].mxu0
    %v162 = vadd.f32 %v82, %v161
    %v163 = vpop.f32.mrb[0].mxu0
    %v164 = vadd.f32 %v86, %v163
    %165 = vdwg.mxu0
    %v166 = vxor.u32 %v156, 2147483648
    %v167 = vxor.u32 %v162, 2147483648
    %v168 = vmul.f32 %v166, 1.442695
    %v169 = vpow.pop %v168
    %v170 = vmul.f32 %v167, 1.442695
    %v171 = vpow.pop %v170
    %v172 = vadd.f32 %v169, 1.0
    %v173 = vadd.f32 %v171, 1.0
    %v174 = vrcp.pop %v172
    %v175 = vmul.f32 1.0, %v174
    %v176 = vrcp.pop %v173
    %v177 = vmul.f32 1.0, %v176
    %v178 = vmul.f32 %v175, %v158
    %v179 = vmul.f32 %v177, %v164
    %180 = vst [vmem:[#allocation7] sm:$0xff] %v178
    %181 = vst [vmem:[#allocation7 + $0x8] sm:$0xff] %v179
    // Predicated region
    $region22: #{tpu_custom_call.1} parent=1 // pred_check
      _
    $region23: #{tpu_custom_call.1} parent=1 // pred_check_branch
      %183 = sbr.rel (0) target = $region25
    $region24: #{tpu_custom_call.1} parent=1 // pred_region
      %s185 = ssub.s32 256, 256
      %186 = vsyncadd [#allocation4], %s185
      %s187 = sshll.u32 [#allocation7], 4
      %s188 = int_to_ptr.vmem [resolvable:$true] %s187
      %193 = dma.vmem_to_hbm [thread:$0]  %s188, 256, %s3, [#allocation4], 128, 128, 8
    $region25: #{tpu_custom_call.1} parent=1 // pred_fallthru
      _
    // Predicated region
    $region26: #{tpu_custom_call.1} parent=1 // pred_check
      _
    $region27: #{tpu_custom_call.1} parent=1 // pred_check_branch
      %195 = sbr.rel (0) target = $region29
    $region28: #{tpu_custom_call.1} parent=1 // pred_region
      %196 = dma.done [#allocation4], 256
    $region29: #{tpu_custom_call.1} parent=1 // pred_fallthru
      _
    %197 = vsyncpa [#allocation3], 1
    %198 = vsyncpa [#allocation6], 1
    %199 = vsyncpa [#allocation4], 1

</llo_original>
